<compile_context>
chip_gen: v7x
topology: tpu7x:2x2x1
jax: 0.10.0
libtpu: 0.0.40
codegen_flags: <defaults>
</compile_context>

<pallas_src>
import math

import jax
import jax.numpy as jnp
from jax.experimental import pallas as pl
from jax.experimental.pallas import tpu as pltpu


def _concat_linear_kernel(x_ref, y_ref, wt_ref, b_ref, o_ref):
    dim = o_ref.shape[-1]
    # Canonical [M,K] @ [K,N] MXU dots with f32 accumulation; static Ref-view
    # slices of the resident pre-transposed weight (no XLU transpose, no copy).
    acc = jnp.dot(x_ref[...], wt_ref[:dim, :], preferred_element_type=jnp.float32)
    acc = acc + jnp.dot(y_ref[...], wt_ref[dim:, :], preferred_element_type=jnp.float32)
    o_ref[...] = (acc + b_ref[...]).astype(o_ref.dtype)


def _round_up(v, m):
    return ((v + m - 1) // m) * m


def _pick_tm_and_vmem(m, dim, act_itemsize, w_itemsize):
    """Generation-aware row-tile size + explicit scoped-VMEM limit."""
    sub = max(8, 32 // act_itemsize)          # sublane packing (8 f32 / 16 bf16)
    m_pad = max(_round_up(m, sub), sub)
    try:
        vmem_cap = int(pltpu.get_tpu_info().vmem_capacity_bytes)
    except Exception:
        vmem_cap = 64 << 20                    # conservative (v7x physical VMEM)

    # Resident weight + bias (count x2 as buffering slack).
    w_bytes = 2 * (2 * dim * dim + dim) * w_itemsize

    if dim < 128 or m_pad <= 1024:
        # Narrow / tiny problem: single (or few) grid steps; overhead dominated.
        tm = min(m_pad, 2048)
    else:
        # Largest tile such that 2-deep buffering of (x, y, out) tiles plus the
        # resident weights stays well inside physical VMEM (key on v7x @ 64 MiB).
        budget = max(int(vmem_cap * 0.6) - w_bytes, 1 << 20)
        tm = budget // (6 * dim * act_itemsize)
        tm = max(sub, (tm // sub) * sub)
        tm = min(tm, 2048, m_pad)

    need = 6 * tm * dim * act_itemsize + w_bytes + (2 << 20)
    vmem_limit = int(min(vmem_cap, max(need, 32 << 20)))
    return tm, vmem_limit


def concat_project(x, y, weight, bias):
    """out = cat([x, y], -1) @ weight.T + bias   (PyTorch nn.Linear semantics).

    x, y:   [..., dim]
    weight: [dim, 2*dim]   (PyTorch Linear weight layout)
    bias:   [dim]
    """
    assert x.shape == y.shape
    dim = x.shape[-1]
    assert weight.shape == (dim, 2 * dim)
    assert bias.shape == (dim,)

    lead = x.shape[:-1]
    m = math.prod(lead) if lead else 1
    if m == 0:  # degenerate leading dim
        return jnp.zeros((*lead, dim), dtype=x.dtype)

    x2 = x.reshape(m, dim)
    y2 = y.reshape(m, dim)
    # One-off XLA transpose to canonical [K, N] layout for the MXU.
    w_t = weight.T                    # [2*dim, dim]
    b2 = bias.reshape(1, dim)

    act_isz = jnp.dtype(x.dtype).itemsize
    w_isz = jnp.dtype(weight.dtype).itemsize
    tm, vmem_limit = _pick_tm_and_vmem(m, dim, act_isz, w_isz)
    grid = (pl.cdiv(m, tm),)

    cost = pl.CostEstimate(
        flops=2 * m * (2 * dim) * dim,
        transcendentals=0,
        bytes_accessed=(3 * m * dim) * act_isz          # x, y read + out write
        + (2 * dim * dim + dim) * w_isz,                # weights + bias
    )

    # TODO(synk): if xprof shows exposed DMA at small/medium dim, add
    # pipeline_mode=pl.Buffered(3) to the x/y in_specs.
    out = pl.pallas_call(
        _concat_linear_kernel,
        out_shape=jax.ShapeDtypeStruct((m, dim), x.dtype),
        grid=grid,
        in_specs=[
            pl.BlockSpec((tm, dim), lambda i: (i, 0)),        # x tile
            pl.BlockSpec((tm, dim), lambda i: (i, 0)),        # y tile
            pl.BlockSpec((2 * dim, dim), lambda i: (0, 0)),   # W^T (VMEM-resident)
            pl.BlockSpec((1, dim), lambda i: (0, 0)),         # bias (resident)
        ],
        out_specs=pl.BlockSpec((tm, dim), lambda i: (i, 0)),
        compiler_params=pltpu.CompilerParams(
            dimension_semantics=("parallel",),
            vmem_limit_bytes=vmem_limit,
        ),
        cost_estimate=cost,
    )(x2, y2, w_t, b2)

    return out.reshape(*lead, dim)


if __name__ == "__main__":
    key = jax.random.PRNGKey(0)
    k_x, k_y, k_w, k_b = jax.random.split(key, 4)

    batch, seq, dim = 2, 8, 32  # small shapes consistent with the module

    x = jax.random.normal(k_x, (batch, seq, dim), dtype=jnp.float32)
    y = jax.random.normal(k_y, (batch, seq, dim), dtype=jnp.float32)

    # Deterministic params, mimicking nn.Linear's uniform(-1/sqrt(fan_in), ...)
    fan_in = 2 * dim
    bound = 1.0 / (fan_in ** 0.5)
    weight = jax.random.uniform(k_w, (dim, 2 * dim), jnp.float32, -bound, bound)
    bias = jax.random.uniform(k_b, (dim,), jnp.float32, -bound, bound)

    out = concat_project(x, y, weight, bias)
    out = jax.block_until_ready(out)

    # Pure-JAX reference check
    ref = jnp.concatenate([x, y], axis=-1) @ weight.T + bias
    assert out.shape == (batch, seq, dim)
    assert jnp.allclose(out, ref, atol=1e-5, rtol=1e-5), "mismatch vs reference"

    print("KERNEL_OK")
</pallas_src>

<mosaic_0001>
module attributes {stable_mosaic.version = 11 : i64} {
  func.func @_concat_linear_kernel(%arg0: i32, %arg1: memref<16x32xf32, #tpu.memory_space<vmem>>, %arg2: memref<16x32xf32, #tpu.memory_space<vmem>>, %arg3: memref<64x32xf32, #tpu.memory_space<vmem>>, %arg4: memref<1x32xf32, #tpu.memory_space<vmem>>, %arg5: memref<16x32xf32, #tpu.memory_space<vmem>>) attributes {dimension_semantics = [#tpu.dimension_semantics<parallel>], iteration_bounds = array<i64: 1>, scalar_prefetch = 0 : i64, scratch_operands = 0 : i64, tpu.core_type = #tpu.core_type<tc>, window_params = [{transform_indices = @transform_0, window_bounds = array<i64: 16, 32>}, {transform_indices = @transform_1, window_bounds = array<i64: 16, 32>}, {pipeline_mode = #tpu.pipeline_mode<synchronous>, transform_indices = @transform_2, window_bounds = array<i64: 64, 32>}, {pipeline_mode = #tpu.pipeline_mode<synchronous>, transform_indices = @transform_3, window_bounds = array<i64: 1, 32>}, {transform_indices = @transform_4, window_bounds = array<i64: 16, 32>}]} {
    %c0 = arith.constant 0 : index
    %c0_0 = arith.constant 0 : index
    %0 = vector.load %arg1[%c0, %c0_0] : memref<16x32xf32, #tpu.memory_space<vmem>>, vector<16x32xf32>
    %c0_1 = arith.constant 0 : index
    %c0_2 = arith.constant 0 : index
    %1 = vector.load %arg3[%c0_1, %c0_2] : memref<64x32xf32, #tpu.memory_space<vmem>>, vector<32x32xf32>
    %cst = arith.constant dense<0.000000e+00> : vector<16x32xf32>
    %2 = tpu.matmul %0, %1, %cst {dimension_numbers = #tpu.dot_dimension_numbers<[1], [0], [0], [1], [0, 0, 1, 1], [], []>} : vector<16x32xf32>, vector<32x32xf32>, vector<16x32xf32> -> vector<16x32xf32>
    %c0_3 = arith.constant 0 : index
    %c0_4 = arith.constant 0 : index
    %3 = vector.load %arg2[%c0_3, %c0_4] : memref<16x32xf32, #tpu.memory_space<vmem>>, vector<16x32xf32>
    %c32 = arith.constant 32 : index
    %c0_5 = arith.constant 0 : index
    %4 = vector.load %arg3[%c32, %c0_5] : memref<64x32xf32, #tpu.memory_space<vmem>>, vector<32x32xf32>
    %cst_6 = arith.constant dense<0.000000e+00> : vector<16x32xf32>
    %5 = tpu.matmul %3, %4, %cst_6 {dimension_numbers = #tpu.dot_dimension_numbers<[1], [0], [0], [1], [0, 0, 1, 1], [], []>} : vector<16x32xf32>, vector<32x32xf32>, vector<16x32xf32> -> vector<16x32xf32>
    %6 = arith.addf %2, %5 : vector<16x32xf32>
    %c0_7 = arith.constant 0 : index
    %c0_8 = arith.constant 0 : index
    %7 = vector.load %arg4[%c0_7, %c0_8] : memref<1x32xf32, #tpu.memory_space<vmem>>, vector<1x32xf32>
    %8 = vector.broadcast %7 : vector<1x32xf32> to vector<16x32xf32>
    %9 = arith.addf %6, %8 : vector<16x32xf32>
    %c0_9 = arith.constant 0 : index
    %c0_10 = arith.constant 0 : index
    %10 = vector.load %arg5[%c0_9, %c0_10] : memref<16x32xf32, #tpu.memory_space<vmem>>, vector<16x32xf32>
    tpu.vector_store %arg5[%c0_9, %c0_10], %9 {strides = array<i32>} : memref<16x32xf32, #tpu.memory_space<vmem>>, vector<16x32xf32>,
    return
  }
  func.func @transform_0(%arg0: i32) -> (i32, i32) {
    %c0_i32 = arith.constant 0 : i32
    %c0_i32_0 = arith.constant 0 : i32
    return %arg0, %c0_i32 : i32, i32
  }
  func.func @transform_1(%arg0: i32) -> (i32, i32) {
    %c0_i32 = arith.constant 0 : i32
    %c0_i32_0 = arith.constant 0 : i32
    return %arg0, %c0_i32 : i32, i32
  }
  func.func @transform_2(%arg0: i32) -> (i32, i32) {
    %c0_i32 = arith.constant 0 : i32
    %c0_i32_0 = arith.constant 0 : i32
    %c0_i32_1 = arith.constant 0 : i32
    return %c0_i32, %c0_i32_0 : i32, i32
  }
  func.func @transform_3(%arg0: i32) -> (i32, i32) {
    %c0_i32 = arith.constant 0 : i32
    %c0_i32_0 = arith.constant 0 : i32
    %c0_i32_1 = arith.constant 0 : i32
    return %c0_i32, %c0_i32_0 : i32, i32
  }
  func.func @transform_4(%arg0: i32) -> (i32, i32) {
    %c0_i32 = arith.constant 0 : i32
    %c0_i32_0 = arith.constant 0 : i32
    return %arg0, %c0_i32 : i32, i32
  }
}

</mosaic_0001>

<llo_original>
// kernel: tpu_custom_call.1
$region0: #{tpu_custom_call.1}
  #allocation0 [shape = 'u32[]', space=smem, size = 0x4, offset = 0x4, fixed_abs, tag = 'smem constant byte address 0x4 - core index']
  #allocation1 [shape = 'u32[144,128]{1,0:T(1,128)}', space=vmem, size = 0x12000, scoped, tag = 'internal scratch']
  %s0 = inlined_call_operand.vmem [shape: f32[16,32], index: 0, kind: input, shape index: {}]
  %s1 = inlined_call_operand.vmem [shape: f32[16,32], index: 1, kind: input, shape index: {}]
  %s2 = inlined_call_operand.vmem [shape: f32[64,32], index: 2, kind: input, shape index: {}]
  %s3 = inlined_call_operand.vmem [shape: f32[1,32], index: 3, kind: input, shape index: {}]
  %s4 = inlined_call_operand.hbm [shape: f32[16,32], index: 4, kind: output, shape index: {}]
  %s5 = sld [smem:[#allocation0]]
  $region26: #{tpu_custom_call.1} parent=0
    _
  %s7 = ssub.s32 1, %s5
  %s8 = scalar_select 0, %s7, %s5
  $region1: #{tpu_custom_call.1} parent=0
    #allocation2 [shape = 'u8[8192]{0}', space=vmem, size = 0x2000, scoped, tag = 'output window, operand 0, single buffered']
    #allocation3 [shape = 's32[1]{0}', space=sflag, size = 0x4, scoped, tag = 'scoped memory for tpu_custom_call.1']
    %9 = vsyncpa [#allocation3], 0
    // Predicated region
    $region2: #{tpu_custom_call.1} parent=1 // pred_check
      _
    $region3: #{tpu_custom_call.1} parent=1 // pred_check_branch
      %11 = sbr.rel (0) target = $region5
    $region4: #{tpu_custom_call.1} parent=1 // pred_region
      _
    $region5: #{tpu_custom_call.1} parent=1 // pred_fallthru
      _
    // Predicated region
    $region6: #{tpu_custom_call.1} parent=1 // pred_check
      _
    $region7: #{tpu_custom_call.1} parent=1 // pred_check_branch
      %13 = sbr.rel (0) target = $region9
    $region8: #{tpu_custom_call.1} parent=1 // pred_region
      _
    $region9: #{tpu_custom_call.1} parent=1 // pred_fallthru
      _
    // Predicated region
    $region10: #{tpu_custom_call.1} parent=1 // pred_check
      _
    $region11: #{tpu_custom_call.1} parent=1 // pred_check_branch
      %15 = sbr.rel (0) target = $region13
    $region12: #{tpu_custom_call.1} parent=1 // pred_region
      _
    $region13: #{tpu_custom_call.1} parent=1 // pred_fallthru
      _
    // Predicated region
    $region14: #{tpu_custom_call.1} parent=1 // pred_check
      _
    $region15: #{tpu_custom_call.1} parent=1 // pred_check_branch
      %17 = sbr.rel (0) target = $region17
    $region16: #{tpu_custom_call.1} parent=1 // pred_region
      _
    $region17: #{tpu_custom_call.1} parent=1 // pred_fallthru
      _
    %v18 = vld [vmem:[%s0] sm:$0xff]
    %v19 = vld [vmem:[%s0 + $0x8] sm:$0xff]
    %v20 = vld [vmem:[%s2] sm:$0xff]
    %v21 = vld [vmem:[%s2 + $0x8] sm:$0xff]
    %v22 = vld [vmem:[%s2 + $0x10] sm:$0xff]
    %v23 = vld [vmem:[%s2 + $0x18] sm:$0xff]
    %v24 = vld [vmem:[%s1] sm:$0xff]
    %v25 = vld [vmem:[%s1 + $0x8] sm:$0xff]
    %v26 = vld [vmem:[%s2 + $0x20] sm:$0xff]
    %v27 = vld [vmem:[%s2 + $0x28] sm:$0xff]
    %v28 = vld [vmem:[%s2 + $0x30] sm:$0xff]
    %v29 = vld [vmem:[%s2 + $0x38] sm:$0xff]
    %vm30 = vcmask 261120
    %v32 = vsel %vm30, %v24, 0
    %v35 = vsel %vm30, %v25, 0
    %37 = vmatprep.subr.mxu0 0.0
    %38 = vmatpush1.msra.mxu0 %v26
    %39 = vmatprep.subr.mxu0 0.0
    %40 = vmatpush1.msra.mxu0 %v27
    %41 = vmatprep.subr.mxu0 0.0
    %42 = vmatpush1.msra.mxu0 %v28
    %43 = vmatprep.subr.mxu0 0.0
    %44 = vmatpush1.msra.mxu0 %v29
    %45 = vmatprep.subr.mxu0 0.0
    %46 = vmatpush1.msra.mxu0 0.0
    %47 = vmatprep.subr.mxu0 0.0
    %48 = vmatpush1.msra.mxu0 0.0
    %49 = vmatprep.subr.mxu0 0.0
    %50 = vmatpush1.msra.mxu0 0.0
    %51 = vmatprep.subr.mxu0 0.0
    %52 = vmatpush1.msra.mxu0 0.0
    %53 = vmatprep.subr.mxu0 0.0
    %54 = vmatpush1.msra.mxu0 0.0
    %55 = vmatprep.subr.mxu0 0.0
    %56 = vmatpush1.msra.mxu0 0.0
    %57 = vmatprep.subr.mxu0 0.0
    %58 = vmatpush1.msra.mxu0 0.0
    %59 = vmatprep.subr.mxu0 0.0
    %60 = vmatpush1.msra.mxu0 0.0
    %61 = vmatprep.subr.mxu0 0.0
    %62 = vmatpush1.msra.mxu0 0.0
    %63 = vmatprep.subr.mxu0 0.0
    %64 = vmatpush1.msra.mxu0 0.0
    %65 = vmatprep.subr.mxu0 0.0
    %66 = vmatpush1.msra.mxu0 0.0
    %67 = vmatprep.subr.mxu0 0.0
    %68 = vmatpush1.msra.mxu0 0.0
    %69 = vmatprep.subr.mxu0 0.0
    %70 = vmatpush1.msra.mxu0 0.0
    %71 = vmatprep.subr.mxu0 0.0
    %72 = vmatpush1.msra.mxu0 0.0
    %73 = vmatprep.subr.mxu0 0.0
    %74 = vmatpush1.msra.mxu0 0.0
    %75 = vmatprep.subr.mxu0 0.0
    %76 = vmatpush1.msra.mxu0 0.0
    %77 = vmatprep.subr.mxu0 0.0
    %78 = vmatpush1.msra.mxu0 0.0
    %79 = vmatprep.subr.mxu0 0.0
    %80 = vmatpush1.msra.mxu0 0.0
    %81 = vmatprep.subr.mxu0 0.0
    %82 = vmatpush1.msra.mxu0 0.0
    %83 = vmatprep.subr.mxu0 0.0
    %84 = vmatpush1.msra.mxu0 0.0
    %85 = vmatprep.subr.mxu0 0.0
    %86 = vmatpush1.msra.mxu0 0.0
    %87 = vmatprep.subr.mxu0 0.0
    %88 = vmatpush1.msra.mxu0 0.0
    %89 = vmatprep.subr.mxu0 0.0
    %90 = vmatpush1.msra.mxu0 0.0
    %91 = vmatprep.subr.mxu0 0.0
    %92 = vmatpush1.msra.mxu0 0.0
    %93 = vmatprep.subr.mxu0 0.0
    %94 = vmatpush1.msra.mxu0 0.0
    %95 = vmatprep.subr.mxu0 0.0
    %96 = vmatpush1.msra.mxu0 0.0
    %97 = vmatprep.subr.mxu0 0.0
    %98 = vmatpush1.msra.mxu0 0.0
    %99 = vmatprep.subr.mxu0 0.0
    %100 = vmatpush1.msra.mxu0 0.0
    %101 = vmatprep.mubr.f32.mxu0 0.0
    %102 = vmatmul.mubr.f32.gmra.mrb[0].mxu0 %v32
    %v103 = vpop.f32.mrb[0].mxu0
    %v104 = vadd.f32 0.0, %v103
    %v105 = vpop.f32.mrb[0].mxu0
    %106 = vmatprep.mubr.f32.mxu0 0.0
    %107 = vmatmul.mubr.f32.gmra.mrb[0].mxu0 %v35
    %v108 = vpop.f32.mrb[0].mxu0
    %v109 = vadd.f32 0.0, %v108
    %v110 = vpop.f32.mrb[0].mxu0
    %111 = vdwg.mxu0
    %v113 = vsel %vm30, %v18, 0
    %v116 = vsel %vm30, %v19, 0
    %118 = vmatprep.subr.mxu0 0.0
    %119 = vmatpush1.msra.mxu0 %v20
    %120 = vmatprep.subr.mxu0 0.0
    %121 = vmatpush1.msra.mxu0 %v21
    %122 = vmatprep.subr.mxu0 0.0
    %123 = vmatpush1.msra.mxu0 %v22
    %124 = vmatprep.subr.mxu0 0.0
    %125 = vmatpush1.msra.mxu0 %v23
    %126 = vmatprep.subr.mxu0 0.0
    %127 = vmatpush1.msra.mxu0 0.0
    %128 = vmatprep.subr.mxu0 0.0
    %129 = vmatpush1.msra.mxu0 0.0
    %130 = vmatprep.subr.mxu0 0.0
    %131 = vmatpush1.msra.mxu0 0.0
    %132 = vmatprep.subr.mxu0 0.0
    %133 = vmatpush1.msra.mxu0 0.0
    %134 = vmatprep.subr.mxu0 0.0
    %135 = vmatpush1.msra.mxu0 0.0
    %136 = vmatprep.subr.mxu0 0.0
    %137 = vmatpush1.msra.mxu0 0.0
    %138 = vmatprep.subr.mxu0 0.0
    %139 = vmatpush1.msra.mxu0 0.0
    %140 = vmatprep.subr.mxu0 0.0
    %141 = vmatpush1.msra.mxu0 0.0
    %142 = vmatprep.subr.mxu0 0.0
    %143 = vmatpush1.msra.mxu0 0.0
    %144 = vmatprep.subr.mxu0 0.0
    %145 = vmatpush1.msra.mxu0 0.0
    %146 = vmatprep.subr.mxu0 0.0
    %147 = vmatpush1.msra.mxu0 0.0
    %148 = vmatprep.subr.mxu0 0.0
    %149 = vmatpush1.msra.mxu0 0.0
    %150 = vmatprep.subr.mxu0 0.0
    %151 = vmatpush1.msra.mxu0 0.0
    %152 = vmatprep.subr.mxu0 0.0
    %153 = vmatpush1.msra.mxu0 0.0
    %154 = vmatprep.subr.mxu0 0.0
    %155 = vmatpush1.msra.mxu0 0.0
    %156 = vmatprep.subr.mxu0 0.0
    %157 = vmatpush1.msra.mxu0 0.0
    %158 = vmatprep.subr.mxu0 0.0
    %159 = vmatpush1.msra.mxu0 0.0
    %160 = vmatprep.subr.mxu0 0.0
    %161 = vmatpush1.msra.mxu0 0.0
    %162 = vmatprep.subr.mxu0 0.0
    %163 = vmatpush1.msra.mxu0 0.0
    %164 = vmatprep.subr.mxu0 0.0
    %165 = vmatpush1.msra.mxu0 0.0
    %166 = vmatprep.subr.mxu0 0.0
    %167 = vmatpush1.msra.mxu0 0.0
    %168 = vmatprep.subr.mxu0 0.0
    %169 = vmatpush1.msra.mxu0 0.0
    %170 = vmatprep.subr.mxu0 0.0
    %171 = vmatpush1.msra.mxu0 0.0
    %172 = vmatprep.subr.mxu0 0.0
    %173 = vmatpush1.msra.mxu0 0.0
    %174 = vmatprep.subr.mxu0 0.0
    %175 = vmatpush1.msra.mxu0 0.0
    %176 = vmatprep.subr.mxu0 0.0
    %177 = vmatpush1.msra.mxu0 0.0
    %178 = vmatprep.subr.mxu0 0.0
    %179 = vmatpush1.msra.mxu0 0.0
    %180 = vmatprep.subr.mxu0 0.0
    %181 = vmatpush1.msra.mxu0 0.0
    %182 = vmatprep.mubr.f32.mxu0 0.0
    %183 = vmatmul.mubr.f32.gmra.mrb[0].mxu0 %v113
    %v184 = vpop.f32.mrb[0].mxu0
    %v185 = vadd.f32 %v104, %v184
    %v186 = vpop.f32.mrb[0].mxu0
    %187 = vmatprep.mubr.f32.mxu0 0.0
    %188 = vmatmul.mubr.f32.gmra.mrb[0].mxu0 %v116
    %v189 = vpop.f32.mrb[0].mxu0
    %v190 = vadd.f32 %v109, %v189
    %v191 = vpop.f32.mrb[0].mxu0
    %192 = vdwg.mxu0
    %v193 = vld [vmem:[%s3] sm:$0x1]
    %v195 = vlaneseq
    %v196 = vshrl.u32 %v195, 7
    %v197 = vsub.s32 0, %v196
    %v198 = vrot.slane %v193, %v197
    %v200 = vadd.f32 %v185, %v198
    %v201 = vadd.f32 %v190, %v198
    %202 = vst.msk [vmem:[#allocation2] sm:$0xff] %vm30, %v200
    %203 = vst.msk [vmem:[#allocation2 + $0x8] sm:$0xff] %vm30, %v201
    // Predicated region
    $region18: #{tpu_custom_call.1} parent=1 // pred_check
      _
    $region19: #{tpu_custom_call.1} parent=1 // pred_check_branch
      %205 = sbr.rel (0) target = $region21
    $region20: #{tpu_custom_call.1} parent=1 // pred_region
      %s207 = ssub.s32 256, 256
      %208 = vsyncadd [#allocation3], %s207
      %s209 = sshll.u32 [#allocation2], 4
      %s210 = int_to_ptr.vmem [resolvable:$true] %s209
      %215 = dma.vmem_to_hbm [thread:$0]  %s210, 256, %s4, [#allocation3], 128, 128, 8
    $region21: #{tpu_custom_call.1} parent=1 // pred_fallthru
      _
    // Predicated region
    $region22: #{tpu_custom_call.1} parent=1 // pred_check
      _
    $region23: #{tpu_custom_call.1} parent=1 // pred_check_branch
      %217 = sbr.rel (0) target = $region25
    $region24: #{tpu_custom_call.1} parent=1 // pred_region
      %218 = dma.done [#allocation3], 256
    $region25: #{tpu_custom_call.1} parent=1 // pred_fallthru
      _
    %219 = vsyncpa [#allocation3], 1

</llo_original>
